<compile_context>
chip_gen: v6e
topology: v6e:2x2x1
jax: 0.10.0
libtpu: 0.0.40
codegen_flags: <defaults>
</compile_context>

<pallas_src>
import functools
import math

import jax
import jax.numpy as jnp
from jax import lax
from jax.experimental import pallas as pl
from jax.experimental.pallas import tpu as pltpu


# ----------------------------------------------------------------------------
# Parameter / buffer setup (glue, plain JAX) — mirrors PositionalEncoding.__init__
# ----------------------------------------------------------------------------
def make_pos_embedding(emb_size: int, maxlen: int = 5000) -> jnp.ndarray:
    den = jnp.exp(-jnp.arange(0, emb_size, 2, dtype=jnp.float32)
                  * (math.log(10000.0) / emb_size))                    # (emb_size // 2,)
    pos = jnp.arange(0, maxlen, dtype=jnp.float32).reshape(maxlen, 1)  # (maxlen, 1)
    pe = jnp.zeros((maxlen, emb_size), dtype=jnp.float32)
    pe = pe.at[:, 0::2].set(jnp.sin(pos * den))
    pe = pe.at[:, 1::2].set(jnp.cos(pos * den))
    return pe[:, None, :]                                              # (maxlen, 1, E)


# ----------------------------------------------------------------------------
# Pallas kernel: out = dropout(x + pos_embedding[s_window])
# ----------------------------------------------------------------------------
def posenc_kernel(seed_ref, x_ref, pe_ref, o_ref, *, dropout_p: float, tile_s: int):
    x = x_ref[...]                     # (TILE_S, B, E)
    pe = pe_ref[...]                   # (TILE_S, 1, E) -> broadcasts over batch (sublanes)
    y = x + pe

    if dropout_p > 0.0:
        ts, b, e = y.shape
        # Global element index (unique across all grid tiles) -> independent,
        # reproducible dropout stream per element regardless of tiling.
        s_off = (pl.program_id(0) * tile_s).astype(jnp.uint32)
        s_idx = lax.broadcasted_iota(jnp.int32, y.shape, 0).astype(jnp.uint32) + s_off
        b_idx = lax.broadcasted_iota(jnp.int32, y.shape, 1).astype(jnp.uint32)
        e_idx = lax.broadcasted_iota(jnp.int32, y.shape, 2).astype(jnp.uint32)
        lin = (s_idx * jnp.uint32(b) + b_idx) * jnp.uint32(e) + e_idx

        # lowbias32-style integer hash mixed with the seed (pure VPU int ops,
        # no transcendentals, no float conversion).
        seed_u = seed_ref[0].astype(jnp.uint32)
        h = lin ^ (seed_u * jnp.uint32(0x9E3779B1))
        h = h ^ (h >> 16)
        h = h * jnp.uint32(0x7FEB352D)
        h = h ^ (h >> 15)
        h = h * jnp.uint32(0x846CA68B)
        h = h ^ (h >> 16)

        # Integer-threshold dropout on the top 31 bits: drop iff r < p * 2^31.
        r = (h >> 1).astype(jnp.int32)                       # uniform in [0, 2^31)
        thr = jnp.int32(min(int(round(dropout_p * (1 << 31))), (1 << 31) - 1))
        keep = r >= thr
        scale = jnp.float32(1.0 / (1.0 - dropout_p))
        y = jnp.where(keep, y, jnp.zeros_like(y)) * scale    # inverted dropout

    o_ref[...] = y.astype(o_ref.dtype)


def _choose_tile_s(S: int, B: int, E: int, itemsize: int,
                   target_bytes: int = 2 * 1024 * 1024) -> int:
    """Pick a sequence tile so (x + out + pe) block bytes ~ target (few MiB).

    Small enough that double-buffering fits comfortably in v7x's 64 MiB VMEM
    (32 MiB scoped default), large enough to amortize the ~0.35 us/step overhead.
    """
    row_bytes = (2 * B * E + E) * itemsize
    tile = max(1, target_bytes // row_bytes)
    tile = min(S, int(tile))
    if tile >= 8:
        tile = (tile // 8) * 8
    return int(tile)


def positional_encoding(token_embedding: jnp.ndarray,
                        pos_embedding: jnp.ndarray,
                        dropout_p: float,
                        seed: int = 0,
                        training: bool = True) -> jnp.ndarray:
    """token_embedding: (S, B, E).  pos_embedding: (maxlen, 1, E)."""
    S, B, E = token_embedding.shape
    assert pos_embedding.shape[0] >= S and pos_embedding.shape[2] == E

    p = float(dropout_p) if training else 0.0
    itemsize = jnp.dtype(token_embedding.dtype).itemsize
    tile_s = _choose_tile_s(S, B, E, itemsize)
    num_tiles = pl.cdiv(S, tile_s)

    seed_arr = jnp.asarray([seed], dtype=jnp.int32)
    kernel = functools.partial(posenc_kernel, dropout_p=p, tile_s=tile_s)

    # Advisory cost for the XLA scheduler: pure bandwidth-bound elementwise op.
    cost = pl.CostEstimate(
        flops=3 * S * B * E,
        transcendentals=0,
        bytes_accessed=(2 * S * B * E + S * E) * itemsize,
    )

    grid_spec = pltpu.PrefetchScalarGridSpec(
        num_scalar_prefetch=1,                 # seed -> SMEM, available to index_maps
        grid=(num_tiles,),
        in_specs=[
            # token embedding tile (double-buffered by the pipeline)
            pl.BlockSpec((tile_s, B, E), lambda i, seed: (i, 0, 0)),
            # S-window of the persistent positional buffer, selected by index_map
            # directly from the full (maxlen, 1, E) array (no wrapper-side slice copy).
            pl.BlockSpec((tile_s, 1, E), lambda i, seed: (i, 0, 0)),
        ],
        out_specs=pl.BlockSpec((tile_s, B, E), lambda i, seed: (i, 0, 0)),
    )

    return pl.pallas_call(
        kernel,
        out_shape=jax.ShapeDtypeStruct((S, B, E), token_embedding.dtype),
        grid_spec=grid_spec,
        compiler_params=pltpu.CompilerParams(
            dimension_semantics=("parallel",),          # shard S-tiles across v7x's 2 TCs
            vmem_limit_bytes=32 * 1024 * 1024,          # explicit, safe on v5e/v6e/v7x
        ),
        cost_estimate=cost,
    )(seed_arr, token_embedding, pos_embedding)


# ----------------------------------------------------------------------------
# Demo / self-check
# ----------------------------------------------------------------------------
if __name__ == "__main__":
    emb_size = 32
    maxlen = 64
    seq_len = 8
    batch = 2
    dropout_p = 0.1

    key = jax.random.PRNGKey(0)
    token_embedding = jax.random.normal(key, (seq_len, batch, emb_size), dtype=jnp.float32)

    pos_embedding = make_pos_embedding(emb_size, maxlen)
    ref = token_embedding + pos_embedding[:seq_len]

    # 1) eval-mode (dropout disabled) — must match x + pos_embedding[:S] exactly.
    out_eval = positional_encoding(token_embedding, pos_embedding, dropout_p,
                                   seed=0, training=False)
    out_eval = jax.block_until_ready(out_eval)
    assert out_eval.shape == (seq_len, batch, emb_size)
    assert jnp.allclose(out_eval, ref, atol=1e-6, rtol=1e-6), "eval-mode mismatch"

    # 2) training-mode (stochastic dropout); kept elements scaled by 1/(1-p),
    #    dropped elements exactly zero.
    out_train = positional_encoding(token_embedding, pos_embedding, dropout_p,
                                    seed=1234, training=True)
    out_train = jax.block_until_ready(out_train)
    scaled_ref = ref / (1.0 - dropout_p)
    matches_kept = jnp.isclose(out_train, scaled_ref, atol=1e-5, rtol=1e-5)
    matches_drop = jnp.isclose(out_train, 0.0, atol=1e-7)
    assert bool(jnp.all(matches_kept | matches_drop)), "dropout output malformed"
    assert bool(jnp.any(matches_kept)), "dropout dropped everything"

    print("KERNEL_OK")
</pallas_src>

<mosaic_0001>
module attributes {stable_mosaic.version = 11 : i64} {
  func.func @posenc_kernel(%arg0: i32, %arg1: memref<1xi32, #tpu.memory_space<smem>>, %arg2: memref<8x2x32xf32, #tpu.memory_space<vmem>>, %arg3: memref<8x1x32xf32, #tpu.memory_space<vmem>>, %arg4: memref<8x2x32xf32, #tpu.memory_space<vmem>>) attributes {dimension_semantics = [#tpu.dimension_semantics<parallel>], iteration_bounds = array<i64: 1>, scalar_prefetch = 1 : i64, scratch_operands = 0 : i64, tpu.core_type = #tpu.core_type<tc>, window_params = [{transform_indices = @transform_0, window_bounds = array<i64: 8, 2, 32>}, {transform_indices = @transform_1, window_bounds = array<i64: 8, 1, 32>}, {transform_indices = @transform_2, window_bounds = array<i64: 8, 2, 32>}]} {
    %c0 = arith.constant 0 : index
    %c0_0 = arith.constant 0 : index
    %c0_1 = arith.constant 0 : index
    %0 = vector.load %arg2[%c0, %c0_0, %c0_1] : memref<8x2x32xf32, #tpu.memory_space<vmem>>, vector<8x2x32xf32>
    %c0_2 = arith.constant 0 : index
    %c0_3 = arith.constant 0 : index
    %c0_4 = arith.constant 0 : index
    %1 = vector.load %arg3[%c0_2, %c0_3, %c0_4] : memref<8x1x32xf32, #tpu.memory_space<vmem>>, vector<8x1x32xf32>
    %2 = vector.broadcast %1 : vector<8x1x32xf32> to vector<8x2x32xf32>
    %3 = arith.addf %0, %2 : vector<8x2x32xf32>
    %c0_5 = arith.constant 0 : index
    %c0_6 = arith.constant 0 : index
    %c0_7 = arith.constant 0 : index
    %4 = vector.load %arg4[%c0_5, %c0_6, %c0_7] : memref<8x2x32xf32, #tpu.memory_space<vmem>>, vector<8x2x32xf32>
    tpu.vector_store %arg4[%c0_5, %c0_6, %c0_7], %3 {strides = array<i32>} : memref<8x2x32xf32, #tpu.memory_space<vmem>>, vector<8x2x32xf32>,
    return
  }
  func.func @transform_0(%arg0: i32, %arg1: memref<1xi32, #tpu.memory_space<smem>>) -> (i32, i32, i32) {
    %c0_i32 = arith.constant 0 : i32
    %c0_i32_0 = arith.constant 0 : i32
    %c0_i32_1 = arith.constant 0 : i32
    return %arg0, %c0_i32, %c0_i32_0 : i32, i32, i32
  }
  func.func @transform_1(%arg0: i32, %arg1: memref<1xi32, #tpu.memory_space<smem>>) -> (i32, i32, i32) {
    %c0_i32 = arith.constant 0 : i32
    %c0_i32_0 = arith.constant 0 : i32
    %c0_i32_1 = arith.constant 0 : i32
    return %arg0, %c0_i32, %c0_i32_0 : i32, i32, i32
  }
  func.func @transform_2(%arg0: i32, %arg1: memref<1xi32, #tpu.memory_space<smem>>) -> (i32, i32, i32) {
    %c0_i32 = arith.constant 0 : i32
    %c0_i32_0 = arith.constant 0 : i32
    %c0_i32_1 = arith.constant 0 : i32
    return %arg0, %c0_i32, %c0_i32_0 : i32, i32, i32
  }
}

</mosaic_0001>

<llo_original>
// kernel: tpu_custom_call.1
$region0: #{tpu_custom_call.1}
  #allocation0 [shape = 'u32[]', space=smem, size = 0x4, offset = 0x4, fixed_abs, tag = 'smem constant byte address 0x4 - core index']
  #allocation1 [shape = 'u32[144,128]{1,0:T(1,128)}', space=vmem, size = 0x12000, scoped, tag = 'internal scratch']
  #allocation2 [shape = 's32[1]{0}', space=sflag, size = 0x4, scoped, tag = 'scoped memory for tpu_custom_call.1']
  #allocation3 [shape = 's32[1]{0:T(128)S(6)}', space=smem, size = 0x200, scoped, tag = 'prefetched SMEM operand 0']
  %s0 = inlined_call_operand.<no memory space> [shape: s32[1], index: 0, kind: input, shape index: {}]
  %s1 = inlined_call_operand.vmem [shape: f32[8,2,32], index: 1, kind: input, shape index: {}]
  %s2 = inlined_call_operand.vmem [shape: f32[64,1,32], index: 2, kind: input, shape index: {}]
  %s3 = inlined_call_operand.hbm [shape: f32[8,2,32], index: 3, kind: output, shape index: {}]
  %s4 = sld [smem:[#allocation0]]
  $region18: #{tpu_custom_call.1} parent=0
    _
  %s6 = ssub.s32 1, %s4
  %s7 = scalar_select 0, %s6, %s4
  %8 = sst [smem:[#allocation3]] %s0
  $region1: #{tpu_custom_call.1} parent=0
    #allocation4 [shape = 'u8[8192]{0}', space=vmem, size = 0x2000, scoped, tag = 'output window, operand 0, single buffered']
    #allocation5 [shape = 's32[1]{0}', space=sflag, size = 0x4, scoped, tag = 'scoped memory for tpu_custom_call.1']
    %9 = vsyncpa [#allocation5], 0
    // Predicated region
    $region2: #{tpu_custom_call.1} parent=1 // pred_check
      _
    $region3: #{tpu_custom_call.1} parent=1 // pred_check_branch
      %11 = sbr.rel (0) target = $region5
    $region4: #{tpu_custom_call.1} parent=1 // pred_region
      _
    $region5: #{tpu_custom_call.1} parent=1 // pred_fallthru
      _
    // Predicated region
    $region6: #{tpu_custom_call.1} parent=1 // pred_check
      _
    $region7: #{tpu_custom_call.1} parent=1 // pred_check_branch
      %13 = sbr.rel (0) target = $region9
    $region8: #{tpu_custom_call.1} parent=1 // pred_region
      _
    $region9: #{tpu_custom_call.1} parent=1 // pred_fallthru
      _
    %v14 = vld [vmem:[%s1] sm:$0x3]
    %v15 = vld [vmem:[%s1 + $0x2] sm:$0x3]
    %v16 = vld [vmem:[%s1 + $0x4] sm:$0x3]
    %v17 = vld [vmem:[%s1 + $0x6] sm:$0x3]
    %v18 = vld [vmem:[%s1 + $0x8] sm:$0x3]
    %v19 = vld [vmem:[%s1 + $0xa] sm:$0x3]
    %v20 = vld [vmem:[%s1 + $0xc] sm:$0x3]
    %v21 = vld [vmem:[%s1 + $0xe] sm:$0x3]
    %v22 = vld [vmem:[%s2] sm:$0x1]
    %v23 = vld [vmem:[%s2 + $0x1] sm:$0x1]
    %v24 = vld [vmem:[%s2 + $0x2] sm:$0x1]
    %v25 = vld [vmem:[%s2 + $0x3] sm:$0x1]
    %v26 = vld [vmem:[%s2 + $0x4] sm:$0x1]
    %v27 = vld [vmem:[%s2 + $0x5] sm:$0x1]
    %v28 = vld [vmem:[%s2 + $0x6] sm:$0x1]
    %v29 = vld [vmem:[%s2 + $0x7] sm:$0x1]
    %v38 = vlaneseq
    %v39 = vshrl.u32 %v38, 7
    %v40 = vsub.s32 0, %v39
    %v41 = vrot.slane %v22, %v40
    %v42 = vlaneseq
    %v43 = vshrl.u32 %v42, 7
    %v44 = vsub.s32 0, %v43
    %v45 = vrot.slane %v23, %v44
    %v46 = vlaneseq
    %v47 = vshrl.u32 %v46, 7
    %v48 = vsub.s32 0, %v47
    %v49 = vrot.slane %v24, %v48
    %v50 = vlaneseq
    %v51 = vshrl.u32 %v50, 7
    %v52 = vsub.s32 0, %v51
    %v53 = vrot.slane %v25, %v52
    %v54 = vlaneseq
    %v55 = vshrl.u32 %v54, 7
    %v56 = vsub.s32 0, %v55
    %v57 = vrot.slane %v26, %v56
    %v58 = vlaneseq
    %v59 = vshrl.u32 %v58, 7
    %v60 = vsub.s32 0, %v59
    %v61 = vrot.slane %v27, %v60
    %v62 = vlaneseq
    %v63 = vshrl.u32 %v62, 7
    %v64 = vsub.s32 0, %v63
    %v65 = vrot.slane %v28, %v64
    %v66 = vlaneseq
    %v67 = vshrl.u32 %v66, 7
    %v68 = vsub.s32 0, %v67
    %v69 = vrot.slane %v29, %v68
    %v78 = vadd.f32 %v14, %v41
    %v79 = vadd.f32 %v15, %v45
    %v80 = vadd.f32 %v16, %v49
    %v81 = vadd.f32 %v17, %v53
    %v82 = vadd.f32 %v18, %v57
    %v83 = vadd.f32 %v19, %v61
    %v84 = vadd.f32 %v20, %v65
    %v85 = vadd.f32 %v21, %v69
    %vm86 = vcmask 254976
    %87 = vst.msk [vmem:[#allocation4] sm:$0x3] %vm86, %v78
    %88 = vst.msk [vmem:[#allocation4 + $0x2] sm:$0x3] %vm86, %v79
    %89 = vst.msk [vmem:[#allocation4 + $0x4] sm:$0x3] %vm86, %v80
    %90 = vst.msk [vmem:[#allocation4 + $0x6] sm:$0x3] %vm86, %v81
    %91 = vst.msk [vmem:[#allocation4 + $0x8] sm:$0x3] %vm86, %v82
    %92 = vst.msk [vmem:[#allocation4 + $0xa] sm:$0x3] %vm86, %v83
    %93 = vst.msk [vmem:[#allocation4 + $0xc] sm:$0x3] %vm86, %v84
    %94 = vst.msk [vmem:[#allocation4 + $0xe] sm:$0x3] %vm86, %v85
    // Predicated region
    $region10: #{tpu_custom_call.1} parent=1 // pred_check
      _
    $region11: #{tpu_custom_call.1} parent=1 // pred_check_branch
      %96 = sbr.rel (0) target = $region13
    $region12: #{tpu_custom_call.1} parent=1 // pred_region
      %s98 = ssub.s32 256, 256
      %99 = vsyncadd [#allocation5], %s98
      %s100 = sshll.u32 [#allocation4], 4
      %s101 = int_to_ptr.vmem [resolvable:$true] %s100
      %106 = dma.vmem_to_hbm [thread:$0]  %s101, 256, %s3, [#allocation5], 32, 32, 2
    $region13: #{tpu_custom_call.1} parent=1 // pred_fallthru
      _
    // Predicated region
    $region14: #{tpu_custom_call.1} parent=1 // pred_check
      _
    $region15: #{tpu_custom_call.1} parent=1 // pred_check_branch
      %108 = sbr.rel (0) target = $region17
    $region16: #{tpu_custom_call.1} parent=1 // pred_region
      %109 = dma.done [#allocation5], 256
    $region17: #{tpu_custom_call.1} parent=1 // pred_fallthru
      _
    %110 = vsyncpa [#allocation5], 1

</llo_original>
